<compile_context>
chip_gen: v7x
topology: tpu7x:2x2x1
jax: 0.10.0
libtpu: 0.0.40
codegen_flags: <defaults>
</compile_context>

<pallas_src>
import functools

import jax
import jax.numpy as jnp
from jax.experimental import pallas as pl
from jax.experimental.pallas import tpu as pltpu


def _ar_shift_kernel(seed_ref, x_ref, o_ref, carry_ref, *, seq_chunks):
    """One (TL, TC) block of the flattened (L, B*E) stream.

    out_block = [carry ; x_block[:-1]];   carry <- x_block[-1].
    """
    @pl.when(pl.program_id(2) == 0)
    def _():
        # Fresh walk over a sequence chunk: seed the carry. Chunk 0 is seeded
        # by the (batch-broadcast) first-token row, chunk 1 by x[chunk_len-1].
        if seq_chunks == 1:
            carry_ref[...] = seed_ref[...]
        else:  # seq_chunks == 2: static 2-way select, both rows are (1, TC)
            p = pl.program_id(1)
            carry_ref[...] = jnp.where(p == 0, seed_ref[0:1, :], seed_ref[1:2, :])

    x_blk = x_ref[...]                               # (TL, TC)
    rolled = pltpu.roll(x_blk, shift=1, axis=0)      # rolled[k] = x_blk[k-1]
    o_ref[...] = rolled                              # one full-block store
    o_ref[0:1, :] = carry_ref[...]                   # overwrite row 0 with carry
    carry_ref[...] = rolled[0:1, :]                  # rolled[0] == x_blk[-1]


def _sublane_rows(itemsize):
    # Native sublane tile rows per dtype width: (8,128) f32, (16,128) bf16,
    # (32,128) int8/fp8.
    return {1: 32, 2: 16, 4: 8}.get(itemsize, 8)


def _hw_config():
    """Generation-aware block-byte budget / VMEM limit / megacore hint."""
    kind = ""
    try:
        kind = jax.devices()[0].device_kind.lower()
    except Exception:
        pass
    # Conservative default (v5e-class / unknown): 2 MiB blocks, 1 TC.
    cfg = {"max_block_bytes": 2 << 20, "vmem_limit_bytes": None, "multi_core": False}
    if "v7" in kind:
        # ~3.2 TB/s HBM, 64 MiB VMEM/TC, 2 TCs: big blocks + raised scoped VMEM
        # (double-buffered in+out at 8 MiB = 32 MiB > 32 MiB default).
        cfg = {"max_block_bytes": 8 << 20, "vmem_limit_bytes": 48 << 20, "multi_core": True}
    elif "v6" in kind:
        # ~1.4 TB/s, 1 TC: 4 MiB blocks fit the 32 MiB scoped default.
        cfg = {"max_block_bytes": 4 << 20, "vmem_limit_bytes": None, "multi_core": False}
    elif "v5" in kind and "lite" not in kind and "v5e" not in kind:
        # v5p-class megacore part: keep 2 MiB blocks under the 16 MiB default.
        cfg = {"max_block_bytes": 2 << 20, "vmem_limit_bytes": None, "multi_core": True}
    elif "v4" in kind:
        cfg = {"max_block_bytes": 2 << 20, "vmem_limit_bytes": None, "multi_core": True}
    return cfg


def _pick_lane_tile(C, multi_core, max_lane_tile=16384):
    """Lane (last-dim) tile.

    On single-TC parts keep TC = C (one contiguous DMA run per row). On
    megacore parts split C in half (when 128-aligned) so both cores get a
    lane chunk; cap chunk width so huge C doesn't blow the VMEM budget.
    """
    if C % 128 != 0:
        return C                      # full-extent lane block
    tc = C
    if multi_core and C % 256 == 0:
        tc = C // 2                   # feed the second TensorCore
    while tc > max_lane_tile and tc % 256 == 0:
        tc //= 2
    return tc


def _pick_seq_tile(L, lane_tile, itemsize, max_block_bytes):
    """Return (TL, L_pad): sublane-aligned tile within the byte budget.

    Prefers a divisor of L; if none exists (ragged L), pads L up to a tile
    multiple (the wrapper slices the padding back off).
    """
    sub = _sublane_rows(itemsize)
    rows = max_block_bytes // max(1, lane_tile * itemsize)
    rows = max(sub, (rows // sub) * sub)
    if L <= rows:
        return L, L                   # one full-extent block
    best = None
    for tl in range(sub, rows + 1, sub):
        if L % tl == 0:
            best = tl
    if best is not None:
        return best, L
    tl = rows                         # ragged L: pad to tile multiple
    L_pad = -(-L // tl) * tl
    return tl, L_pad


def autoregressive_shift(x, first_token, *, seq_tile=None, lane_tile=None,
                         max_block_bytes=None, donate_x=False):
    """x: (L, B, E), first_token: (1, 1, E) -> (L, B, E)."""
    L, B, E = x.shape
    C = B * E
    itemsize = jnp.dtype(x.dtype).itemsize
    cfg = _hw_config()
    if max_block_bytes is None:
        max_block_bytes = cfg["max_block_bytes"]

    # Lane-dense flattening + one-time batch broadcast of the first token.
    x2 = x.reshape(L, C)
    first_row = (
        jnp.broadcast_to(first_token.reshape(1, 1, E), (1, B, E))
        .reshape(1, C)
        .astype(x.dtype)
    )

    TC = lane_tile if lane_tile is not None else _pick_lane_tile(C, cfg["multi_core"])
    assert C % TC == 0, "lane tile must divide B*E"
    lane_chunks = C // TC

    # On megacore parts where C can't be lane-split, split the sequence axis
    # into two parallel chunks instead (each chunk seeds its own carry).
    sub = _sublane_rows(itemsize)
    seq_chunks = 1
    if (seq_tile is None and cfg["multi_core"] and lane_chunks == 1
            and L >= 2 * sub and L % (2 * sub) == 0):
        seq_chunks = 2
    chunk_len = L // seq_chunks

    if seq_tile is not None:
        assert chunk_len % seq_tile == 0, "seq tile must divide the sequence chunk"
        TL, chunk_pad = seq_tile, chunk_len
    else:
        TL, chunk_pad = _pick_seq_tile(chunk_len, TC, itemsize, max_block_bytes)

    L_pad = chunk_pad * seq_chunks
    if L_pad != L:
        x2 = jnp.pad(x2, ((0, L_pad - L), (0, 0)))

    # Seeds: row p seeds the carried row at the start of sequence chunk p.
    if seq_chunks == 1:
        seeds = first_row
    else:
        prev = [x2[p * chunk_pad - 1:p * chunk_pad] for p in range(1, seq_chunks)]
        seeds = jnp.concatenate([first_row] + prev, axis=0)

    bpc = chunk_pad // TL             # sequence blocks per chunk
    grid = (lane_chunks, seq_chunks, bpc)

    kernel = functools.partial(_ar_shift_kernel, seq_chunks=seq_chunks)

    out2 = pl.pallas_call(
        kernel,
        out_shape=jax.ShapeDtypeStruct((L_pad, C), x.dtype),
        grid_spec=pltpu.PrefetchScalarGridSpec(
            num_scalar_prefetch=0,
            grid=grid,
            in_specs=[
                # Tiny seeds block (full extent on the chunk axis), resident.
                pl.BlockSpec((seq_chunks, TC), lambda c, p, l: (0, c)),
                # x stream: sequential blocks within each sequence chunk.
                pl.BlockSpec((TL, TC), lambda c, p, l: (p * bpc + l, c)),
            ],
            out_specs=pl.BlockSpec((TL, TC), lambda c, p, l: (p * bpc + l, c)),
            scratch_shapes=[pltpu.VMEM((1, TC), x.dtype)],   # carried row (per-TC)
        ),
        compiler_params=pltpu.CompilerParams(
            dimension_semantics=("parallel", "parallel", "arbitrary"),
            vmem_limit_bytes=cfg["vmem_limit_bytes"],
        ),
        # Optional in-place shift when the caller donates x (removes the second
        # L*C HBM allocation; rows are disjoint so no RAW hazard).
        input_output_aliases=({1: 0} if donate_x else {}),
    )(seeds, x2)
    return out2[:L].reshape(L, B, E)


def _xavier_uniform_first_token(key, embed_dim, dtype=jnp.float32):
    # PyTorch xavier_uniform_ on (1, 1, E): fan_in = fan_out = E
    #   bound = sqrt(6 / (2E)) = sqrt(3 / E)
    bound = float(jnp.sqrt(3.0 / embed_dim))
    ft = jax.random.uniform(key, (1, 1, embed_dim), minval=-bound, maxval=bound)
    return ft.astype(dtype)


def _reference(x, first_token):
    L, B, E = x.shape
    first = jnp.broadcast_to(first_token.reshape(1, 1, E), (1, B, E)).astype(x.dtype)
    return jnp.concatenate([first, x[:-1]], axis=0)


if __name__ == "__main__":
    key = jax.random.PRNGKey(0)
    k_ft, k_x, k_x2, k_x3, k_x4 = jax.random.split(key, 5)

    # --- 1) Module-sized case (L=8, B=2, E=32), auto tiling ----------------
    L, B, E = 8, 2, 32
    first_token = _xavier_uniform_first_token(k_ft, E)
    x = jax.random.normal(k_x, (L, B, E), dtype=jnp.float32)
    out = jax.block_until_ready(autoregressive_shift(x, first_token))
    assert out.shape == (L, B, E) and out.dtype == x.dtype
    assert jnp.allclose(out, _reference(x, first_token)), "mismatch (small case)"

    # --- 2) Multi-block carry + two parallel lane chunks (forced tiles) ----
    L2, B2, E2 = 32, 2, 128
    ft2 = _xavier_uniform_first_token(k_ft, E2)
    xb = jax.random.normal(k_x2, (L2, B2, E2), dtype=jnp.float32)
    out2 = jax.block_until_ready(
        autoregressive_shift(xb, ft2, seq_tile=8, lane_tile=128))
    assert jnp.array_equal(out2, _reference(xb, ft2)), "mismatch (tiled case)"

    # --- 3) bf16, lane width not 128-splittable: exercises dtype-aware -----
    # --- sublane tiling and (on megacore parts) the 2-way sequence split ---
    L3, B3, E3 = 64, 2, 48
    ft3 = _xavier_uniform_first_token(k_ft, E3, dtype=jnp.bfloat16)
    xc = jax.random.normal(k_x3, (L3, B3, E3)).astype(jnp.bfloat16)
    out3 = jax.block_until_ready(autoregressive_shift(xc, ft3))
    assert jnp.array_equal(out3, _reference(xc, ft3)), "mismatch (bf16 case)"

    # --- 4) Ragged L over the block budget: exercises the pad-to-tile path -
    L4, B4, E4 = 20, 1, 128
    ft4 = _xavier_uniform_first_token(k_ft, E4)
    xd = jax.random.normal(k_x4, (L4, B4, E4), dtype=jnp.float32)
    out4 = jax.block_until_ready(
        autoregressive_shift(xd, ft4, max_block_bytes=8 * 128 * 4))
    assert jnp.array_equal(out4, _reference(xd, ft4)), "mismatch (ragged case)"

    print("KERNEL_OK")
</pallas_src>

<mosaic_0001>
module attributes {stable_mosaic.version = 11 : i64} {
  func.func @_ar_shift_kernel(%arg0: i32, %arg1: i32, %arg2: i32, %arg3: memref<1x64xf32, #tpu.memory_space<vmem>>, %arg4: memref<8x64xf32, #tpu.memory_space<vmem>>, %arg5: memref<8x64xf32, #tpu.memory_space<vmem>>, %arg6: memref<1x64xf32, #tpu.memory_space<vmem>>) attributes {dimension_semantics = [#tpu.dimension_semantics<parallel>, #tpu.dimension_semantics<parallel>, #tpu.dimension_semantics<arbitrary>], iteration_bounds = array<i64: 1, 1, 1>, scalar_prefetch = 0 : i64, scratch_operands = 1 : i64, tpu.core_type = #tpu.core_type<tc>, window_params = [{transform_indices = @transform_0, window_bounds = array<i64: 1, 64>}, {transform_indices = @transform_1, window_bounds = array<i64: 8, 64>}, {transform_indices = @transform_2, window_bounds = array<i64: 8, 64>}]} {
    %c0_i32 = arith.constant 0 : i32
    %0 = arith.cmpi eq, %arg2, %c0_i32 : i32
    %1 = arith.extui %0 : i1 to i32
    %c0_i32_0 = arith.constant 0 : i32
    %2 = arith.cmpi ne, %1, %c0_i32_0 : i32
    scf.if %2 {
      %c0_10 = arith.constant 0 : index
      %c0_11 = arith.constant 0 : index
      %10 = vector.load %arg3[%c0_10, %c0_11] : memref<1x64xf32, #tpu.memory_space<vmem>>, vector<1x64xf32>
      %c0_12 = arith.constant 0 : index
      %c0_13 = arith.constant 0 : index
      %11 = vector.load %arg6[%c0_12, %c0_13] : memref<1x64xf32, #tpu.memory_space<vmem>>, vector<1x64xf32>
      tpu.vector_store %arg6[%c0_12, %c0_13], %10 {strides = array<i32>} : memref<1x64xf32, #tpu.memory_space<vmem>>, vector<1x64xf32>,
    } else {
    }
    %c0 = arith.constant 0 : index
    %c0_1 = arith.constant 0 : index
    %3 = vector.load %arg4[%c0, %c0_1] : memref<8x64xf32, #tpu.memory_space<vmem>>, vector<8x64xf32>
    %c1_i32 = arith.constant 1 : i32
    %4 = tpu.dynamic_rotate %3 by %c1_i32 dim 0 : vector<8x64xf32>, i32 -> vector<8x64xf32>
    %c0_2 = arith.constant 0 : index
    %c0_3 = arith.constant 0 : index
    %5 = vector.load %arg5[%c0_2, %c0_3] : memref<8x64xf32, #tpu.memory_space<vmem>>, vector<8x64xf32>
    tpu.vector_store %arg5[%c0_2, %c0_3], %4 {strides = array<i32>} : memref<8x64xf32, #tpu.memory_space<vmem>>, vector<8x64xf32>,
    %c0_4 = arith.constant 0 : index
    %c0_5 = arith.constant 0 : index
    %6 = vector.load %arg6[%c0_4, %c0_5] : memref<1x64xf32, #tpu.memory_space<vmem>>, vector<1x64xf32>
    %c0_6 = arith.constant 0 : index
    %c0_7 = arith.constant 0 : index
    %7 = vector.load %arg5[%c0_6, %c0_7] : memref<8x64xf32, #tpu.memory_space<vmem>>, vector<1x64xf32>
    tpu.vector_store %arg5[%c0_6, %c0_7], %6 {strides = array<i32>} : memref<8x64xf32, #tpu.memory_space<vmem>>, vector<1x64xf32>,
    %8 = vector.extract_strided_slice %4 {offsets = [0, 0], sizes = [1, 64], strides = [1, 1]} : vector<8x64xf32> to vector<1x64xf32>
    %c0_8 = arith.constant 0 : index
    %c0_9 = arith.constant 0 : index
    %9 = vector.load %arg6[%c0_8, %c0_9] : memref<1x64xf32, #tpu.memory_space<vmem>>, vector<1x64xf32>
    tpu.vector_store %arg6[%c0_8, %c0_9], %8 {strides = array<i32>} : memref<1x64xf32, #tpu.memory_space<vmem>>, vector<1x64xf32>,
    return
  }
  func.func @transform_0(%arg0: i32, %arg1: i32, %arg2: i32) -> (i32, i32) {
    %c0_i32 = arith.constant 0 : i32
    %c0_i32_0 = arith.constant 0 : i32
    return %c0_i32, %arg0 : i32, i32
  }
  func.func @transform_1(%arg0: i32, %arg1: i32, %arg2: i32) -> (i32, i32) {
    %c1_i32 = arith.constant 1 : i32
    %0 = arith.muli %arg1, %c1_i32 : i32
    %1 = arith.addi %0, %arg2 : i32
    %c0_i32 = arith.constant 0 : i32
    return %1, %arg0 : i32, i32
  }
  func.func @transform_2(%arg0: i32, %arg1: i32, %arg2: i32) -> (i32, i32) {
    %c1_i32 = arith.constant 1 : i32
    %0 = arith.muli %arg1, %c1_i32 : i32
    %1 = arith.addi %0, %arg2 : i32
    %c0_i32 = arith.constant 0 : i32
    return %1, %arg0 : i32, i32
  }
}

</mosaic_0001>

<llo_original>
// kernel: tpu_custom_call.1
$region0: #{tpu_custom_call.1}
  #allocation0 [shape = 'u32[]', space=smem, size = 0x4, offset = 0x4, fixed_abs, tag = 'smem constant byte address 0x4 - core index']
  #allocation1 [shape = 'u32[144,128]{1,0:T(1,128)}', space=vmem, size = 0x12000, scoped, tag = 'internal scratch']
  #allocation2 [shape = 'f32[1,64]{1,0:T(1,128)}', space=vmem, size = 0x200, scoped, tag = 'scratch operand']
  %s0 = inlined_call_operand.hbm [shape: f32[1,64], index: 0, kind: input, shape index: {}]
  %s1 = inlined_call_operand.hbm [shape: f32[8,64], index: 1, kind: input, shape index: {}]
  %s2 = inlined_call_operand.hbm [shape: f32[8,64], index: 2, kind: output, shape index: {}]
  %s3 = sld [smem:[#allocation0]]
  $region30: #{tpu_custom_call.1} parent=0
    _
  %s5 = ssub.s32 1, %s3
  %s6 = scalar_select 0, %s5, %s3
  $region1: #{tpu_custom_call.1} parent=0
    #allocation3 [shape = 'u8[512]{0}', space=vmem, size = 0x400, scoped, tag = 'input window, operand 0, single buffered']
    #allocation4 [shape = 's32[1]{0}', space=sflag, size = 0x4, scoped, tag = 'scoped memory for tpu_custom_call.1']
    #allocation5 [shape = 's32[1]{0}', space=sflag, size = 0x4, scoped, tag = 'scoped memory for tpu_custom_call.1']
    #allocation6 [shape = 'u8[4096]{0}', space=vmem, size = 0x1000, scoped, tag = 'input window, operand 1, single buffered']
    #allocation7 [shape = 's32[1]{0}', space=sflag, size = 0x4, scoped, tag = 'scoped memory for tpu_custom_call.1']
    #allocation8 [shape = 'u8[4096]{0}', space=vmem, size = 0x1000, scoped, tag = 'output window, operand 0, single buffered']
    %7 = vsyncpa [#allocation4], 0
    %8 = vsyncpa [#allocation7], 0
    %9 = vsyncpa [#allocation5], 0
    // Predicated region
    $region2: #{tpu_custom_call.1} parent=1 // pred_check
      _
    $region3: #{tpu_custom_call.1} parent=1 // pred_check_branch
      %11 = sbr.rel (0) target = $region5
    $region4: #{tpu_custom_call.1} parent=1 // pred_region
      %s13 = ssub.s32 16, 16
      %14 = vsyncadd [#allocation4], %s13
      %s16 = sshll.u32 [#allocation3], 4
      %s17 = int_to_ptr.vmem [resolvable:$true] %s16
      %19 = dma.hbm_to_vmem [thread:$0]  %s0, 16, %s17, [#allocation4]
    $region5: #{tpu_custom_call.1} parent=1 // pred_fallthru
      _
    // Predicated region
    $region6: #{tpu_custom_call.1} parent=1 // pred_check
      _
    $region7: #{tpu_custom_call.1} parent=1 // pred_check_branch
      %21 = sbr.rel (0) target = $region9
    $region8: #{tpu_custom_call.1} parent=1 // pred_region
      %s22 = sadd.s32 0, 0
      %s24 = ssub.s32 128, 128
      %25 = vsyncadd [#allocation7], %s24
      %s26 = smul.addr %s22, 128
      %s27 = scalar_lea.hbm %s1, %s26
      %s29 = sshll.u32 [#allocation6], 4
      %s30 = int_to_ptr.vmem [resolvable:$true] %s29
      %32 = dma.hbm_to_vmem [thread:$0]  %s27, 128, %s30, [#allocation7]
    $region9: #{tpu_custom_call.1} parent=1 // pred_fallthru
      _
    // Predicated region
    $region10: #{tpu_custom_call.1} parent=1 // pred_check
      _
    $region11: #{tpu_custom_call.1} parent=1 // pred_check_branch
      %34 = sbr.rel (0) target = $region13
    $region12: #{tpu_custom_call.1} parent=1 // pred_region
      %35 = dma.done [#allocation4], 16
    $region13: #{tpu_custom_call.1} parent=1 // pred_fallthru
      _
    // Predicated region
    $region14: #{tpu_custom_call.1} parent=1 // pred_check
      _
    $region15: #{tpu_custom_call.1} parent=1 // pred_check_branch
      %37 = sbr.rel (0) target = $region17
    $region16: #{tpu_custom_call.1} parent=1 // pred_region
      %38 = dma.done [#allocation7], 128
    $region17: #{tpu_custom_call.1} parent=1 // pred_fallthru
      _
    %s39 = sadd.s32 0, 0
    %s40 = sadd.s32 0, 0
    %p41 = scmp.eq.s32.totalorder 0, 0
    // Predicated region
    $region18: #{tpu_custom_call.1} parent=1 // pred_check
      %p42 = pneg %p41
    $region19: #{tpu_custom_call.1} parent=1 // pred_check_branch
      %44 = sbr.rel (%p42) target = $region21
    $region20: #{tpu_custom_call.1} parent=1 // pred_region
      %v45 = vld [vmem:[#allocation3] sm:$0x1]
      %vm46 = vcmask 516096
      %47 = vst.msk [vmem:[#allocation2] sm:$0x1] %vm46, %v45
    $region21: #{tpu_custom_call.1} parent=1 // pred_fallthru
      _
    %v48 = vld [vmem:[#allocation6] sm:$0xff]
    %v49 = vrot.slane %v48, 7
    %vm50 = vcmask 523264
    %51 = vst.msk [vmem:[#allocation8] sm:$0xff] %vm50, %v49
    %v52 = vld [vmem:[#allocation2] sm:$0x1]
    %vm53 = vcmask 516096
    %54 = vst.msk [vmem:[#allocation8] sm:$0x1] %vm53, %v52
    %55 = vst.msk [vmem:[#allocation2] sm:$0x1] %vm53, %v49
    // Predicated region
    $region22: #{tpu_custom_call.1} parent=1 // pred_check
      _
    $region23: #{tpu_custom_call.1} parent=1 // pred_check_branch
      %57 = sbr.rel (0) target = $region25
    $region24: #{tpu_custom_call.1} parent=1 // pred_region
      %s58 = sadd.s32 0, 0
      %s60 = ssub.s32 128, 128
      %61 = vsyncadd [#allocation5], %s60
      %s62 = smul.addr %s58, 128
      %s63 = scalar_lea.hbm %s2, %s62
      %s65 = sshll.u32 [#allocation8], 4
      %s66 = int_to_ptr.vmem [resolvable:$true] %s65
      %68 = dma.vmem_to_hbm [thread:$0]  %s66, 128, %s63, [#allocation5]
    $region25: #{tpu_custom_call.1} parent=1 // pred_fallthru
      _
    // Predicated region
    $region26: #{tpu_custom_call.1} parent=1 // pred_check
      _
    $region27: #{tpu_custom_call.1} parent=1 // pred_check_branch
      %70 = sbr.rel (0) target = $region29
    $region28: #{tpu_custom_call.1} parent=1 // pred_region
      %71 = dma.done [#allocation5], 128
    $region29: #{tpu_custom_call.1} parent=1 // pred_fallthru
      _
    %72 = vsyncpa [#allocation4], 1
    %73 = vsyncpa [#allocation7], 1
    %74 = vsyncpa [#allocation5], 1

</llo_original>
